<compile_context>
chip_gen: v7x
topology: tpu7x:2x2x1
jax: 0.10.0
libtpu: 0.0.40
codegen_flags: <defaults>
</compile_context>

<pallas_src>
import jax
import jax.numpy as jnp
from jax.experimental import pallas as pl
from jax.experimental.pallas import tpu as pltpu

BN_EPS = 1e-5


def _make_fused_kernel(num_layers):
    """Kernel computing the whole Linear+BN chain in one invocation.

    Ref layout: (x_ref, w0_ref, gb0_ref, w1_ref, gb1_ref, ..., o_ref) where
    w_i is (in_i, out_i) and gb_i is (2, out_i) = [gamma; beta].
    """

    def kernel(*refs):
        x_ref = refs[0]
        o_ref = refs[-1]
        param_refs = refs[1:-1]

        act = x_ref[...]                                   # (B, in_0) f32
        for l in range(num_layers):                        # static unroll
            wt_ref = param_refs[2 * l]
            gb_ref = param_refs[2 * l + 1]
            # Linear (bias dropped: cancels exactly under training-mode BN).
            y = jnp.dot(act, wt_ref[...],
                        preferred_element_type=jnp.float32)   # (B, out)
            # BatchNorm1d, training mode: batch mean / biased variance.
            mean = jnp.mean(y, axis=0, keepdims=True)          # (1, out)
            yc = y - mean                                      # reused below
            var = jnp.mean(yc * yc, axis=0, keepdims=True)     # (1, out)
            inv = jax.lax.rsqrt(var + BN_EPS)
            act = yc * inv * gb_ref[0:1, :] + gb_ref[1:2, :]   # (B, out)

        o_ref[...] = act.astype(o_ref.dtype)

    return kernel


class NeuralNetModulePallas:
    """JAX/Pallas port of Neural_Net_module (batch_norm-enabled configuration).

    Whole forward = single fused, jitted pallas_call; weights stored in
    kernel-ready layout at init time.
    """

    def __init__(self, state_size, action_size, td, layer_sizes=(), key=None):
        del td  # unused in forward
        sizes = [state_size] + list(layer_sizes) + [action_size]
        if key is None:
            key = jax.random.PRNGKey(0)

        # PyTorch-style Linear init (kept for the reference path); the kernel
        # only consumes the pre-transposed weight and the packed gamma/beta.
        self.layers = []          # (w (out,in), b (out,)) for the reference
        self.kernel_params = []   # (wt (in,out), gb (2,out)) for the kernel
        for inp, out in zip(sizes[:-1], sizes[1:]):
            key, kw, kb = jax.random.split(key, 3)
            bound = 1.0 / jnp.sqrt(jnp.float32(inp))
            w = jax.random.uniform(kw, (out, inp), jnp.float32, -bound, bound)
            b = jax.random.uniform(kb, (out,), jnp.float32, -bound, bound)
            gamma = jnp.ones((out,), jnp.float32)          # BatchNorm1d defaults
            beta = jnp.zeros((out,), jnp.float32)
            self.layers.append((w, b, gamma, beta))
            wt = jnp.asarray(w.T)                          # (in, out), once
            gb = jnp.stack([gamma, beta], axis=0)          # (2, out), once
            self.kernel_params.append((wt, gb))

        self._out_features = sizes[-1]
        self._num_layers = len(self.kernel_params)
        self._kernel = _make_fused_kernel(self._num_layers)

        vmem_spec = pl.BlockSpec(memory_space=pltpu.MemorySpace.VMEM)
        num_inputs = 1 + 2 * self._num_layers
        out_features = self._out_features
        kernel = self._kernel

        def forward(x, *flat_params):
            return pl.pallas_call(
                kernel,
                out_shape=jax.ShapeDtypeStruct((x.shape[0], out_features),
                                               x.dtype),
                in_specs=[vmem_spec] * num_inputs,
                out_specs=vmem_spec,
            )(x, *flat_params)

        self._forward = jax.jit(forward)

    def __call__(self, state):
        flat = []
        for wt, gb in self.kernel_params:
            flat.append(wt)
            flat.append(gb)
        return self._forward(state, *flat)

    # Pure-JAX reference mirroring the PyTorch module (with bias; the bias
    # cancels under training-mode BN so results match the bias-free kernel).
    def reference(self, state):
        for (w, b, gamma, beta) in self.layers:
            y = state @ w.T + b
            m = jnp.mean(y, axis=0, keepdims=True)
            v = jnp.mean((y - m) ** 2, axis=0, keepdims=True)
            state = (y - m) / jnp.sqrt(v + BN_EPS) * gamma + beta
        return state


if __name__ == "__main__":
    key = jax.random.PRNGKey(0)
    key, xk = jax.random.split(key)

    batch = 16
    state_size = 32
    hidden = [64, 64]
    action_size = 8

    model = NeuralNetModulePallas(state_size, action_size, td=None,
                                  layer_sizes=hidden, key=key)

    state = jax.random.normal(xk, (batch, state_size), dtype=jnp.float32)

    out = model(state)
    out = jax.block_until_ready(out)

    ref = model.reference(state)
    assert out.shape == (batch, action_size)
    assert jnp.allclose(out, ref, rtol=1e-4, atol=1e-4), "mismatch vs reference"

    print("KERNEL_OK")
</pallas_src>

<mosaic_0001>
module attributes {stable_mosaic.version = 11 : i64} {
  func.func @kernel(%arg0: memref<16x32xf32, #tpu.memory_space<vmem>>, %arg1: memref<32x64xf32, #tpu.memory_space<vmem>>, %arg2: memref<2x64xf32, #tpu.memory_space<vmem>>, %arg3: memref<64x64xf32, #tpu.memory_space<vmem>>, %arg4: memref<2x64xf32, #tpu.memory_space<vmem>>, %arg5: memref<64x8xf32, #tpu.memory_space<vmem>>, %arg6: memref<2x8xf32, #tpu.memory_space<vmem>>, %arg7: memref<16x8xf32, #tpu.memory_space<vmem>>) attributes {dimension_semantics = [], scalar_prefetch = 0 : i64, scratch_operands = 0 : i64, tpu.core_type = #tpu.core_type<tc>} {
    %c0 = arith.constant 0 : index
    %c0_0 = arith.constant 0 : index
    %0 = vector.load %arg0[%c0, %c0_0] : memref<16x32xf32, #tpu.memory_space<vmem>>, vector<16x32xf32>
    %c0_1 = arith.constant 0 : index
    %c0_2 = arith.constant 0 : index
    %1 = vector.load %arg1[%c0_1, %c0_2] : memref<32x64xf32, #tpu.memory_space<vmem>>, vector<32x64xf32>
    %cst = arith.constant dense<0.000000e+00> : vector<16x64xf32>
    %2 = tpu.matmul %0, %1, %cst {dimension_numbers = #tpu.dot_dimension_numbers<[1], [0], [0], [1], [0, 0, 1, 1], [], []>} : vector<16x32xf32>, vector<32x64xf32>, vector<16x64xf32> -> vector<16x64xf32>
    %cst_3 = arith.constant dense<0.000000e+00> : vector<64xf32>
    %3 = vector.multi_reduction <add>, %2, %cst_3 [0] : vector<16x64xf32> to vector<64xf32>
    %4 = vector.shape_cast %3 : vector<64xf32> to vector<1x64xf32>
    %cst_4 = arith.constant 1.600000e+01 : f32
    %5 = vector.broadcast %cst_4 : f32 to vector<1x64xf32>
    %6 = arith.divf %4, %5 : vector<1x64xf32>
    %7 = vector.broadcast %6 : vector<1x64xf32> to vector<16x64xf32>
    %8 = arith.subf %2, %7 : vector<16x64xf32>
    %9 = arith.mulf %8, %8 : vector<16x64xf32>
    %cst_5 = arith.constant dense<0.000000e+00> : vector<64xf32>
    %10 = vector.multi_reduction <add>, %9, %cst_5 [0] : vector<16x64xf32> to vector<64xf32>
    %11 = vector.shape_cast %10 : vector<64xf32> to vector<1x64xf32>
    %cst_6 = arith.constant 1.600000e+01 : f32
    %12 = vector.broadcast %cst_6 : f32 to vector<1x64xf32>
    %13 = arith.divf %11, %12 : vector<1x64xf32>
    %cst_7 = arith.constant 9.99999974E-6 : f32
    %14 = vector.broadcast %cst_7 : f32 to vector<1x64xf32>
    %15 = arith.addf %13, %14 : vector<1x64xf32>
    %16 = math.rsqrt %15 : vector<1x64xf32>
    %17 = vector.broadcast %16 : vector<1x64xf32> to vector<16x64xf32>
    %18 = arith.mulf %8, %17 : vector<16x64xf32>
    %c0_8 = arith.constant 0 : index
    %c0_9 = arith.constant 0 : index
    %19 = vector.load %arg2[%c0_8, %c0_9] : memref<2x64xf32, #tpu.memory_space<vmem>>, vector<1x64xf32>
    %20 = vector.broadcast %19 : vector<1x64xf32> to vector<16x64xf32>
    %21 = arith.mulf %18, %20 : vector<16x64xf32>
    %c1 = arith.constant 1 : index
    %c0_10 = arith.constant 0 : index
    %22 = vector.load %arg2[%c1, %c0_10] : memref<2x64xf32, #tpu.memory_space<vmem>>, vector<1x64xf32>
    %23 = vector.broadcast %22 : vector<1x64xf32> to vector<16x64xf32>
    %24 = arith.addf %21, %23 : vector<16x64xf32>
    %c0_11 = arith.constant 0 : index
    %c0_12 = arith.constant 0 : index
    %25 = vector.load %arg3[%c0_11, %c0_12] : memref<64x64xf32, #tpu.memory_space<vmem>>, vector<64x64xf32>
    %cst_13 = arith.constant dense<0.000000e+00> : vector<16x64xf32>
    %26 = tpu.matmul %24, %25, %cst_13 {dimension_numbers = #tpu.dot_dimension_numbers<[1], [0], [0], [1], [0, 0, 1, 1], [], []>} : vector<16x64xf32>, vector<64x64xf32>, vector<16x64xf32> -> vector<16x64xf32>
    %cst_14 = arith.constant dense<0.000000e+00> : vector<64xf32>
    %27 = vector.multi_reduction <add>, %26, %cst_14 [0] : vector<16x64xf32> to vector<64xf32>
    %28 = vector.shape_cast %27 : vector<64xf32> to vector<1x64xf32>
    %cst_15 = arith.constant 1.600000e+01 : f32
    %29 = vector.broadcast %cst_15 : f32 to vector<1x64xf32>
    %30 = arith.divf %28, %29 : vector<1x64xf32>
    %31 = vector.broadcast %30 : vector<1x64xf32> to vector<16x64xf32>
    %32 = arith.subf %26, %31 : vector<16x64xf32>
    %33 = arith.mulf %32, %32 : vector<16x64xf32>
    %cst_16 = arith.constant dense<0.000000e+00> : vector<64xf32>
    %34 = vector.multi_reduction <add>, %33, %cst_16 [0] : vector<16x64xf32> to vector<64xf32>
    %35 = vector.shape_cast %34 : vector<64xf32> to vector<1x64xf32>
    %cst_17 = arith.constant 1.600000e+01 : f32
    %36 = vector.broadcast %cst_17 : f32 to vector<1x64xf32>
    %37 = arith.divf %35, %36 : vector<1x64xf32>
    %cst_18 = arith.constant 9.99999974E-6 : f32
    %38 = vector.broadcast %cst_18 : f32 to vector<1x64xf32>
    %39 = arith.addf %37, %38 : vector<1x64xf32>
    %40 = math.rsqrt %39 : vector<1x64xf32>
    %41 = vector.broadcast %40 : vector<1x64xf32> to vector<16x64xf32>
    %42 = arith.mulf %32, %41 : vector<16x64xf32>
    %c0_19 = arith.constant 0 : index
    %c0_20 = arith.constant 0 : index
    %43 = vector.load %arg4[%c0_19, %c0_20] : memref<2x64xf32, #tpu.memory_space<vmem>>, vector<1x64xf32>
    %44 = vector.broadcast %43 : vector<1x64xf32> to vector<16x64xf32>
    %45 = arith.mulf %42, %44 : vector<16x64xf32>
    %c1_21 = arith.constant 1 : index
    %c0_22 = arith.constant 0 : index
    %46 = vector.load %arg4[%c1_21, %c0_22] : memref<2x64xf32, #tpu.memory_space<vmem>>, vector<1x64xf32>
    %47 = vector.broadcast %46 : vector<1x64xf32> to vector<16x64xf32>
    %48 = arith.addf %45, %47 : vector<16x64xf32>
    %c0_23 = arith.constant 0 : index
    %c0_24 = arith.constant 0 : index
    %49 = vector.load %arg5[%c0_23, %c0_24] : memref<64x8xf32, #tpu.memory_space<vmem>>, vector<64x8xf32>
    %cst_25 = arith.constant dense<0.000000e+00> : vector<16x8xf32>
    %50 = tpu.matmul %48, %49, %cst_25 {dimension_numbers = #tpu.dot_dimension_numbers<[1], [0], [0], [1], [0, 0, 1, 1], [], []>} : vector<16x64xf32>, vector<64x8xf32>, vector<16x8xf32> -> vector<16x8xf32>
    %cst_26 = arith.constant dense<0.000000e+00> : vector<8xf32>
    %51 = vector.multi_reduction <add>, %50, %cst_26 [0] : vector<16x8xf32> to vector<8xf32>
    %52 = vector.shape_cast %51 : vector<8xf32> to vector<1x8xf32>
    %cst_27 = arith.constant 1.600000e+01 : f32
    %53 = vector.broadcast %cst_27 : f32 to vector<1x8xf32>
    %54 = arith.divf %52, %53 : vector<1x8xf32>
    %55 = vector.broadcast %54 : vector<1x8xf32> to vector<16x8xf32>
    %56 = arith.subf %50, %55 : vector<16x8xf32>
    %57 = arith.mulf %56, %56 : vector<16x8xf32>
    %cst_28 = arith.constant dense<0.000000e+00> : vector<8xf32>
    %58 = vector.multi_reduction <add>, %57, %cst_28 [0] : vector<16x8xf32> to vector<8xf32>
    %59 = vector.shape_cast %58 : vector<8xf32> to vector<1x8xf32>
    %cst_29 = arith.constant 1.600000e+01 : f32
    %60 = vector.broadcast %cst_29 : f32 to vector<1x8xf32>
    %61 = arith.divf %59, %60 : vector<1x8xf32>
    %cst_30 = arith.constant 9.99999974E-6 : f32
    %62 = vector.broadcast %cst_30 : f32 to vector<1x8xf32>
    %63 = arith.addf %61, %62 : vector<1x8xf32>
    %64 = math.rsqrt %63 : vector<1x8xf32>
    %65 = vector.broadcast %64 : vector<1x8xf32> to vector<16x8xf32>
    %66 = arith.mulf %56, %65 : vector<16x8xf32>
    %c0_31 = arith.constant 0 : index
    %c0_32 = arith.constant 0 : index
    %67 = vector.load %arg6[%c0_31, %c0_32] : memref<2x8xf32, #tpu.memory_space<vmem>>, vector<1x8xf32>
    %68 = vector.broadcast %67 : vector<1x8xf32> to vector<16x8xf32>
    %69 = arith.mulf %66, %68 : vector<16x8xf32>
    %c1_33 = arith.constant 1 : index
    %c0_34 = arith.constant 0 : index
    %70 = vector.load %arg6[%c1_33, %c0_34] : memref<2x8xf32, #tpu.memory_space<vmem>>, vector<1x8xf32>
    %71 = vector.broadcast %70 : vector<1x8xf32> to vector<16x8xf32>
    %72 = arith.addf %69, %71 : vector<16x8xf32>
    %c0_35 = arith.constant 0 : index
    %c0_36 = arith.constant 0 : index
    %73 = vector.load %arg7[%c0_35, %c0_36] : memref<16x8xf32, #tpu.memory_space<vmem>>, vector<16x8xf32>
    tpu.vector_store %arg7[%c0_35, %c0_36], %72 {strides = array<i32>} : memref<16x8xf32, #tpu.memory_space<vmem>>, vector<16x8xf32>,
    return
  }
}

</mosaic_0001>

<llo_original>
// kernel: forward.1
$region0: #{forward.1}
  #allocation0 [shape = 'u32[]', space=smem, size = 0x4, offset = 0x4, fixed_abs, tag = 'smem constant byte address 0x4 - core index']
  #allocation1 [shape = 'u32[144,128]{1,0:T(1,128)}', space=vmem, size = 0x12000, scoped, tag = 'internal scratch']
  %s0 = inlined_call_operand.vmem [shape: f32[16,32], index: 0, kind: input, shape index: {}]
  %s1 = inlined_call_operand.hbm [shape: f32[32,64], index: 1, kind: input, shape index: {}]
  %s2 = inlined_call_operand.vmem [shape: f32[2,64], index: 2, kind: input, shape index: {}]
  %s3 = inlined_call_operand.vmem [shape: f32[64,64], index: 3, kind: input, shape index: {}]
  %s4 = inlined_call_operand.hbm [shape: f32[2,64], index: 4, kind: input, shape index: {}]
  %s5 = inlined_call_operand.vmem [shape: f32[64,8], index: 5, kind: input, shape index: {}]
  %s6 = inlined_call_operand.vmem [shape: f32[2,8], index: 6, kind: input, shape index: {}]
  %s7 = inlined_call_operand.vmem [shape: f32[16,8], index: 7, kind: output, shape index: {}]
  %s8 = sld [smem:[#allocation0]]
  $region46: #{forward.1} parent=0
    _
  %s10 = ssub.s32 1, %s8
  %s11 = scalar_select 0, %s10, %s8
  $region1: #{forward.1} parent=0
    #allocation2 [shape = 'u8[16384]{0}', space=vmem, size = 0x4000, scoped, tag = 'input window, operand 1, single buffered']
    #allocation3 [shape = 's32[1]{0}', space=sflag, size = 0x4, scoped, tag = 'scoped memory for forward.1']
    #allocation4 [shape = 'u8[1024]{0}', space=vmem, size = 0x400, scoped, tag = 'input window, operand 4, single buffered']
    #allocation5 [shape = 's32[1]{0}', space=sflag, size = 0x4, scoped, tag = 'scoped memory for forward.1']
    %12 = vsyncpa [#allocation3], 0
    %13 = vsyncpa [#allocation5], 0
    // Predicated region
    $region2: #{forward.1} parent=1 // pred_check
      _
    $region3: #{forward.1} parent=1 // pred_check_branch
      %15 = sbr.rel (0) target = $region5
    $region4: #{forward.1} parent=1 // pred_region
      _
    $region5: #{forward.1} parent=1 // pred_fallthru
      _
    // Predicated region
    $region6: #{forward.1} parent=1 // pred_check
      _
    $region7: #{forward.1} parent=1 // pred_check_branch
      %17 = sbr.rel (0) target = $region9
    $region8: #{forward.1} parent=1 // pred_region
      %s19 = ssub.s32 512, 512
      %20 = vsyncadd [#allocation3], %s19
      %s21 = sshll.u32 [#allocation2], 4
      %s22 = int_to_ptr.vmem [resolvable:$true] %s21
      %27 = dma.hbm_to_vmem [thread:$0]  %s1, 512, %s22, [#allocation3], 128, 128, 8
    $region9: #{forward.1} parent=1 // pred_fallthru
      _
    // Predicated region
    $region10: #{forward.1} parent=1 // pred_check
      _
    $region11: #{forward.1} parent=1 // pred_check_branch
      %29 = sbr.rel (0) target = $region13
    $region12: #{forward.1} parent=1 // pred_region
      _
    $region13: #{forward.1} parent=1 // pred_fallthru
      _
    // Predicated region
    $region14: #{forward.1} parent=1 // pred_check
      _
    $region15: #{forward.1} parent=1 // pred_check_branch
      %31 = sbr.rel (0) target = $region17
    $region16: #{forward.1} parent=1 // pred_region
      _
    $region17: #{forward.1} parent=1 // pred_fallthru
      _
    // Predicated region
    $region18: #{forward.1} parent=1 // pred_check
      _
    $region19: #{forward.1} parent=1 // pred_check_branch
      %33 = sbr.rel (0) target = $region21
    $region20: #{forward.1} parent=1 // pred_region
      %s35 = ssub.s32 32, 32
      %36 = vsyncadd [#allocation5], %s35
      %s38 = sshll.u32 [#allocation4], 4
      %s39 = int_to_ptr.vmem [resolvable:$true] %s38
      %41 = dma.hbm_to_vmem [thread:$0]  %s4, 32, %s39, [#allocation5]
    $region21: #{forward.1} parent=1 // pred_fallthru
      _
    // Predicated region
    $region22: #{forward.1} parent=1 // pred_check
      _
    $region23: #{forward.1} parent=1 // pred_check_branch
      %43 = sbr.rel (0) target = $region25
    $region24: #{forward.1} parent=1 // pred_region
      _
    $region25: #{forward.1} parent=1 // pred_fallthru
      _
    // Predicated region
    $region26: #{forward.1} parent=1 // pred_check
      _
    $region27: #{forward.1} parent=1 // pred_check_branch
      %45 = sbr.rel (0) target = $region29
    $region28: #{forward.1} parent=1 // pred_region
      _
    $region29: #{forward.1} parent=1 // pred_fallthru
      _
    // Predicated region
    $region30: #{forward.1} parent=1 // pred_check
      _
    $region31: #{forward.1} parent=1 // pred_check_branch
      %47 = sbr.rel (0) target = $region33
    $region32: #{forward.1} parent=1 // pred_region
      %48 = dma.done [#allocation3], 512
    $region33: #{forward.1} parent=1 // pred_fallthru
      _
    // Predicated region
    $region34: #{forward.1} parent=1 // pred_check
      _
    $region35: #{forward.1} parent=1 // pred_check_branch
      %50 = sbr.rel (0) target = $region37
    $region36: #{forward.1} parent=1 // pred_region
      %51 = dma.done [#allocation5], 32
    $region37: #{forward.1} parent=1 // pred_fallthru
      _
    %v52 = vld [vmem:[%s0] sm:$0xff]
    %v53 = vld [vmem:[%s0 + $0x8] sm:$0xff]
    %v54 = vld [vmem:[#allocation2] sm:$0xff]
    %v55 = vld [vmem:[#allocation2 + $0x8] sm:$0xff]
    %v56 = vld [vmem:[#allocation2 + $0x10] sm:$0xff]
    %v57 = vld [vmem:[#allocation2 + $0x18] sm:$0xff]
    %vm58 = vcmask 261120
    %v60 = vsel %vm58, %v52, 0
    %v63 = vsel %vm58, %v53, 0
    %65 = vmatprep.subr.mxu0 0.0
    %66 = vmatpush1.msra.mxu0 %v54
    %67 = vmatprep.subr.mxu0 0.0
    %68 = vmatpush1.msra.mxu0 %v55
    %69 = vmatprep.subr.mxu0 0.0
    %70 = vmatpush1.msra.mxu0 %v56
    %71 = vmatprep.subr.mxu0 0.0
    %72 = vmatpush1.msra.mxu0 %v57
    %73 = vmatprep.subr.mxu0 0.0
    %74 = vmatpush1.msra.mxu0 0.0
    %75 = vmatprep.subr.mxu0 0.0
    %76 = vmatpush1.msra.mxu0 0.0
    %77 = vmatprep.subr.mxu0 0.0
    %78 = vmatpush1.msra.mxu0 0.0
    %79 = vmatprep.subr.mxu0 0.0
    %80 = vmatpush1.msra.mxu0 0.0
    %81 = vmatprep.subr.mxu0 0.0
    %82 = vmatpush1.msra.mxu0 0.0
    %83 = vmatprep.subr.mxu0 0.0
    %84 = vmatpush1.msra.mxu0 0.0
    %85 = vmatprep.subr.mxu0 0.0
    %86 = vmatpush1.msra.mxu0 0.0
    %87 = vmatprep.subr.mxu0 0.0
    %88 = vmatpush1.msra.mxu0 0.0
    %89 = vmatprep.subr.mxu0 0.0
    %90 = vmatpush1.msra.mxu0 0.0
    %91 = vmatprep.subr.mxu0 0.0
    %92 = vmatpush1.msra.mxu0 0.0
    %93 = vmatprep.subr.mxu0 0.0
    %94 = vmatpush1.msra.mxu0 0.0
    %95 = vmatprep.subr.mxu0 0.0
    %96 = vmatpush1.msra.mxu0 0.0
    %97 = vmatprep.subr.mxu0 0.0
    %98 = vmatpush1.msra.mxu0 0.0
    %99 = vmatprep.subr.mxu0 0.0
    %100 = vmatpush1.msra.mxu0 0.0
    %101 = vmatprep.subr.mxu0 0.0
    %102 = vmatpush1.msra.mxu0 0.0
    %103 = vmatprep.subr.mxu0 0.0
    %104 = vmatpush1.msra.mxu0 0.0
    %105 = vmatprep.subr.mxu0 0.0
    %106 = vmatpush1.msra.mxu0 0.0
    %107 = vmatprep.subr.mxu0 0.0
    %108 = vmatpush1.msra.mxu0 0.0
    %109 = vmatprep.subr.mxu0 0.0
    %110 = vmatpush1.msra.mxu0 0.0
    %111 = vmatprep.subr.mxu0 0.0
    %112 = vmatpush1.msra.mxu0 0.0
    %113 = vmatprep.subr.mxu0 0.0
    %114 = vmatpush1.msra.mxu0 0.0
    %115 = vmatprep.subr.mxu0 0.0
    %116 = vmatpush1.msra.mxu0 0.0
    %117 = vmatprep.subr.mxu0 0.0
    %118 = vmatpush1.msra.mxu0 0.0
    %119 = vmatprep.subr.mxu0 0.0
    %120 = vmatpush1.msra.mxu0 0.0
    %121 = vmatprep.subr.mxu0 0.0
    %122 = vmatpush1.msra.mxu0 0.0
    %123 = vmatprep.subr.mxu0 0.0
    %124 = vmatpush1.msra.mxu0 0.0
    %125 = vmatprep.subr.mxu0 0.0
    %126 = vmatpush1.msra.mxu0 0.0
    %127 = vmatprep.subr.mxu0 0.0
    %128 = vmatpush1.msra.mxu0 0.0
    %129 = vmatprep.mubr.f32.mxu0 0.0
    %130 = vmatmul.mubr.f32.gmra.mrb[0].mxu0 %v60
    %v131 = vpop.f32.mrb[0].mxu0
    %v132 = vadd.f32 0.0, %v131
    %v133 = vpop.f32.mrb[0].mxu0
    %134 = vmatprep.mubr.f32.mxu0 0.0
    %135 = vmatmul.mubr.f32.gmra.mrb[0].mxu0 %v63
    %v136 = vpop.f32.mrb[0].mxu0
    %v137 = vadd.f32 0.0, %v136
    %v138 = vpop.f32.mrb[0].mxu0
    %139 = vdwg.mxu0
    %vm140 = vcmask 523264
    %v141 = vsel %vm140, %v132, 0.0
    %v142 = vsel %vm140, %v137, 0.0
    %v143 = vadd.f32 %v141, %v142
    %v144 = vrot.slane %v143, 4
    %v145 = vadd.f32 %v143, %v144
    %v146 = vrot.slane %v145, 2
    %v147 = vadd.f32 %v145, %v146
    %v148 = vrot.slane %v147, 1
    %v149 = vadd.f32 %v147, %v148
    %v150 = vrcp.pop 16.0
    %v151 = vmul.f32 %v149, %v150
    %v152 = vsub.f32 %v132, %v151
    %v153 = vsub.f32 %v137, %v151
    %v154 = vmul.f32 %v152, %v152
    %v155 = vmul.f32 %v153, %v153
    %v156 = vsel %vm140, %v154, 0.0
    %v157 = vsel %vm140, %v155, 0.0
    %v158 = vadd.f32 %v156, %v157
    %v159 = vrot.slane %v158, 4
    %v160 = vadd.f32 %v158, %v159
    %v161 = vrot.slane %v160, 2
    %v162 = vadd.f32 %v160, %v161
    %v163 = vrot.slane %v162, 1
    %v164 = vadd.f32 %v162, %v163
    %v165 = vmul.f32 %v164, %v150
    %v166 = vadd.f32 %v165, 1e-05
    %v167 = vrsqrt.pop %v166
    %v168 = vmul.f32 %v152, %v167
    %v169 = vmul.f32 %v153, %v167
    %v170 = vld [vmem:[%s2] sm:$0x1]
    %v171 = vlaneseq
    %v172 = vshrl.u32 %v171, 7
    %v173 = vsub.s32 0, %v172
    %v174 = vrot.slane %v170, %v173
    %v175 = vmul.f32 %v168, %v174
    %v176 = vmul.f32 %v169, %v174
    %v177 = vld [vmem:[%s2 + $0x1] sm:$0x1]
    %v178 = vlaneseq
    %v179 = vshrl.u32 %v178, 7
    %v180 = vsub.s32 0, %v179
    %v181 = vrot.slane %v177, %v180
    %v182 = vadd.f32 %v175, %v181
    %v183 = vadd.f32 %v176, %v181
    %v184 = vld [vmem:[%s3] sm:$0xff]
    %v185 = vld [vmem:[%s3 + $0x8] sm:$0xff]
    %v186 = vld [vmem:[%s3 + $0x10] sm:$0xff]
    %v187 = vld [vmem:[%s3 + $0x18] sm:$0xff]
    %v188 = vld [vmem:[%s3 + $0x20] sm:$0xff]
    %v189 = vld [vmem:[%s3 + $0x28] sm:$0xff]
    %v190 = vld [vmem:[%s3 + $0x30] sm:$0xff]
    %v191 = vld [vmem:[%s3 + $0x38] sm:$0xff]
    %v193 = vsel %vm140, %v182, 0
    %v196 = vsel %vm140, %v183, 0
    %198 = vmatprep.subr.mxu0 0.0
    %199 = vmatpush1.msra.mxu0 %v184
    %200 = vmatprep.subr.mxu0 0.0
    %201 = vmatpush1.msra.mxu0 %v185
    %202 = vmatprep.subr.mxu0 0.0
    %203 = vmatpush1.msra.mxu0 %v186
    %204 = vmatprep.subr.mxu0 0.0
    %205 = vmatpush1.msra.mxu0 %v187
    %206 = vmatprep.subr.mxu0 0.0
    %207 = vmatpush1.msra.mxu0 %v188
    %208 = vmatprep.subr.mxu0 0.0
    %209 = vmatpush1.msra.mxu0 %v189
    %210 = vmatprep.subr.mxu0 0.0
    %211 = vmatpush1.msra.mxu0 %v190
    %212 = vmatprep.subr.mxu0 0.0
    %213 = vmatpush1.msra.mxu0 %v191
    %214 = vmatprep.subr.mxu0 0.0
    %215 = vmatpush1.msra.mxu0 0.0
    %216 = vmatprep.subr.mxu0 0.0
    %217 = vmatpush1.msra.mxu0 0.0
    %218 = vmatprep.subr.mxu0 0.0
    %219 = vmatpush1.msra.mxu0 0.0
    %220 = vmatprep.subr.mxu0 0.0
    %221 = vmatpush1.msra.mxu0 0.0
    %222 = vmatprep.subr.mxu0 0.0
    %223 = vmatpush1.msra.mxu0 0.0
    %224 = vmatprep.subr.mxu0 0.0
    %225 = vmatpush1.msra.mxu0 0.0
    %226 = vmatprep.subr.mxu0 0.0
    %227 = vmatpush1.msra.mxu0 0.0
    %228 = vmatprep.subr.mxu0 0.0
    %229 = vmatpush1.msra.mxu0 0.0
    %230 = vmatprep.subr.mxu0 0.0
    %231 = vmatpush1.msra.mxu0 0.0
    %232 = vmatprep.subr.mxu0 0.0
    %233 = vmatpush1.msra.mxu0 0.0
    %234 = vmatprep.subr.mxu0 0.0
    %235 = vmatpush1.msra.mxu0 0.0
    %236 = vmatprep.subr.mxu0 0.0
    %237 = vmatpush1.msra.mxu0 0.0
    %238 = vmatprep.subr.mxu0 0.0
    %239 = vmatpush1.msra.mxu0 0.0
    %240 = vmatprep.subr.mxu0 0.0
    %241 = vmatpush1.msra.mxu0 0.0
    %242 = vmatprep.subr.mxu0 0.0
    %243 = vmatpush1.msra.mxu0 0.0
    %244 = vmatprep.subr.mxu0 0.0
    %245 = vmatpush1.msra.mxu0 0.0
    %246 = vmatprep.subr.mxu0 0.0
    %247 = vmatpush1.msra.mxu0 0.0
    %248 = vmatprep.subr.mxu0 0.0
    %249 = vmatpush1.msra.mxu0 0.0
    %250 = vmatprep.subr.mxu0 0.0
    %251 = vmatpush1.msra.mxu0 0.0
    %252 = vmatprep.subr.mxu0 0.0
    %253 = vmatpush1.msra.mxu0 0.0
    %254 = vmatprep.subr.mxu0 0.0
    %255 = vmatpush1.msra.mxu0 0.0
    %256 = vmatprep.subr.mxu0 0.0
    %257 = vmatpush1.msra.mxu0 0.0
    %258 = vmatprep.subr.mxu0 0.0
    %259 = vmatpush1.msra.mxu0 0.0
    %260 = vmatprep.subr.mxu0 0.0
    %261 = vmatpush1.msra.mxu0 0.0
    %262 = vmatprep.mubr.f32.mxu0 0.0
    %263 = vmatmul.mubr.f32.gmra.mrb[0].mxu0 %v193
    %v264 = vpop.f32.mrb[0].mxu0
    %v265 = vadd.f32 0.0, %v264
    %v266 = vpop.f32.mrb[0].mxu0
    %267 = vmatprep.mubr.f32.mxu0 0.0
    %268 = vmatmul.mubr.f32.gmra.mrb[0].mxu0 %v196
    %v269 = vpop.f32.mrb[0].mxu0
    %v270 = vadd.f32 0.0, %v269
    %v271 = vpop.f32.mrb[0].mxu0
    %272 = vdwg.mxu0
    %v273 = vsel %vm140, %v265, 0.0
    %v274 = vsel %vm140, %v270, 0.0
    %v275 = vadd.f32 %v273, %v274
    %v276 = vrot.slane %v275, 4
    %v277 = vadd.f32 %v275, %v276
    %v278 = vrot.slane %v277, 2
    %v279 = vadd.f32 %v277, %v278
    %v280 = vrot.slane %v279, 1
    %v281 = vadd.f32 %v279, %v280
    %v282 = vmul.f32 %v281, %v150
    %v283 = vsub.f32 %v265, %v282
    %v284 = vsub.f32 %v270, %v282
    %v285 = vmul.f32 %v283, %v283
    %v286 = vmul.f32 %v284, %v284
    %v287 = vsel %vm140, %v285, 0.0
    %v288 = vsel %vm140, %v286, 0.0
    %v289 = vadd.f32 %v287, %v288
    %v290 = vrot.slane %v289, 4
    %v291 = vadd.f32 %v289, %v290
    %v292 = vrot.slane %v291, 2
    %v293 = vadd.f32 %v291, %v292
    %v294 = vrot.slane %v293, 1
    %v295 = vadd.f32 %v293, %v294
    %v296 = vmul.f32 %v295, %v150
    %v297 = vadd.f32 %v296, 1e-05
    %v298 = vrsqrt.pop %v297
    %v299 = vmul.f32 %v283, %v298
    %v300 = vmul.f32 %v284, %v298
    %v301 = vld [vmem:[#allocation4] sm:$0x1]
    %v302 = vlaneseq
    %v303 = vshrl.u32 %v302, 7
    %v304 = vsub.s32 0, %v303
    %v305 = vrot.slane %v301, %v304
    %v306 = vmul.f32 %v299, %v305
    %v307 = vmul.f32 %v300, %v305
    %v308 = vld [vmem:[#allocation4 + $0x1] sm:$0x1]
    %v309 = vlaneseq
    %v310 = vshrl.u32 %v309, 7
    %v311 = vsub.s32 0, %v310
    %v312 = vrot.slane %v308, %v311
    %v313 = vadd.f32 %v306, %v312
    %v314 = vadd.f32 %v307, %v312
    %v315 = vld [vmem:[%s5] sm:$0xff]
    %v316 = vld [vmem:[%s5 + $0x8] sm:$0xff]
    %v317 = vld [vmem:[%s5 + $0x10] sm:$0xff]
    %v318 = vld [vmem:[%s5 + $0x18] sm:$0xff]
    %v319 = vld [vmem:[%s5 + $0x20] sm:$0xff]
    %v320 = vld [vmem:[%s5 + $0x28] sm:$0xff]
    %v321 = vld [vmem:[%s5 + $0x30] sm:$0xff]
    %v322 = vld [vmem:[%s5 + $0x38] sm:$0xff]
    %v324 = vsel %vm140, %v313, 0
    %v327 = vsel %vm140, %v314, 0
    %329 = vmatprep.subr.mxu0 0.0
    %330 = vmatpush1.msra.mxu0 %v315
    %331 = vmatprep.subr.mxu0 0.0
    %332 = vmatpush1.msra.mxu0 %v316
    %333 = vmatprep.subr.mxu0 0.0
    %334 = vmatpush1.msra.mxu0 %v317
    %335 = vmatprep.subr.mxu0 0.0
    %336 = vmatpush1.msra.mxu0 %v318
    %337 = vmatprep.subr.mxu0 0.0
    %338 = vmatpush1.msra.mxu0 %v319
    %339 = vmatprep.subr.mxu0 0.0
    %340 = vmatpush1.msra.mxu0 %v320
    %341 = vmatprep.subr.mxu0 0.0
    %342 = vmatpush1.msra.mxu0 %v321
    %343 = vmatprep.subr.mxu0 0.0
    %344 = vmatpush1.msra.mxu0 %v322
    %345 = vmatprep.subr.mxu0 0.0
    %346 = vmatpush1.msra.mxu0 0.0
    %347 = vmatprep.subr.mxu0 0.0
    %348 = vmatpush1.msra.mxu0 0.0
    %349 = vmatprep.subr.mxu0 0.0
    %350 = vmatpush1.msra.mxu0 0.0
    %351 = vmatprep.subr.mxu0 0.0
    %352 = vmatpush1.msra.mxu0 0.0
    %353 = vmatprep.subr.mxu0 0.0
    %354 = vmatpush1.msra.mxu0 0.0
    %355 = vmatprep.subr.mxu0 0.0
    %356 = vmatpush1.msra.mxu0 0.0
    %357 = vmatprep.subr.mxu0 0.0
    %358 = vmatpush1.msra.mxu0 0.0
    %359 = vmatprep.subr.mxu0 0.0
    %360 = vmatpush1.msra.mxu0 0.0
    %361 = vmatprep.subr.mxu0 0.0
    %362 = vmatpush1.msra.mxu0 0.0
    %363 = vmatprep.subr.mxu0 0.0
    %364 = vmatpush1.msra.mxu0 0.0
    %365 = vmatprep.subr.mxu0 0.0
    %366 = vmatpush1.msra.mxu0 0.0
    %367 = vmatprep.subr.mxu0 0.0
    %368 = vmatpush1.msra.mxu0 0.0
    %369 = vmatprep.subr.mxu0 0.0
    %370 = vmatpush1.msra.mxu0 0.0
    %371 = vmatprep.subr.mxu0 0.0
    %372 = vmatpush1.msra.mxu0 0.0
    %373 = vmatprep.subr.mxu0 0.0
    %374 = vmatpush1.msra.mxu0 0.0
    %375 = vmatprep.subr.mxu0 0.0
    %376 = vmatpush1.msra.mxu0 0.0
    %377 = vmatprep.subr.mxu0 0.0
    %378 = vmatpush1.msra.mxu0 0.0
    %379 = vmatprep.subr.mxu0 0.0
    %380 = vmatpush1.msra.mxu0 0.0
    %381 = vmatprep.subr.mxu0 0.0
    %382 = vmatpush1.msra.mxu0 0.0
    %383 = vmatprep.subr.mxu0 0.0
    %384 = vmatpush1.msra.mxu0 0.0
    %385 = vmatprep.subr.mxu0 0.0
    %386 = vmatpush1.msra.mxu0 0.0
    %387 = vmatprep.subr.mxu0 0.0
    %388 = vmatpush1.msra.mxu0 0.0
    %389 = vmatprep.subr.mxu0 0.0
    %390 = vmatpush1.msra.mxu0 0.0
    %391 = vmatprep.subr.mxu0 0.0
    %392 = vmatpush1.msra.mxu0 0.0
    %393 = vmatprep.mubr.f32.mxu0 0.0
    %394 = vmatmul.mubr.f32.gmra.mrb[0].mxu0 %v324
    %v395 = vpop.f32.mrb[0].mxu0
    %v396 = vadd.f32 0.0, %v395
    %v397 = vpop.f32.mrb[0].mxu0
    %398 = vmatprep.mubr.f32.mxu0 0.0
    %399 = vmatmul.mubr.f32.gmra.mrb[0].mxu0 %v327
    %v400 = vpop.f32.mrb[0].mxu0
    %v401 = vadd.f32 0.0, %v400
    %v402 = vpop.f32.mrb[0].mxu0
    %403 = vdwg.mxu0
    %vm404 = vcmask 64512
    %v405 = vsel %vm404, %v396, 0.0
    %v406 = vsel %vm404, %v401, 0.0
    %v407 = vadd.f32 %v405, %v406
    %v408 = vrot.slane %v407, 4
    %v409 = vadd.f32 %v407, %v408
    %v410 = vrot.slane %v409, 2
    %v411 = vadd.f32 %v409, %v410
    %v412 = vrot.slane %v411, 1
    %v413 = vadd.f32 %v411, %v412
    %v414 = vmul.f32 %v413, %v150
    %v415 = vsub.f32 %v396, %v414
    %v416 = vsub.f32 %v401, %v414
    %v417 = vmul.f32 %v415, %v415
    %v418 = vmul.f32 %v416, %v416
    %v419 = vsel %vm404, %v417, 0.0
    %v420 = vsel %vm404, %v418, 0.0
    %v421 = vadd.f32 %v419, %v420
    %v422 = vrot.slane %v421, 4
    %v423 = vadd.f32 %v421, %v422
    %v424 = vrot.slane %v423, 2
    %v425 = vadd.f32 %v423, %v424
    %v426 = vrot.slane %v425, 1
    %v427 = vadd.f32 %v425, %v426
    %v428 = vmul.f32 %v427, %v150
    %v429 = vadd.f32 %v428, 1e-05
    %v430 = vrsqrt.pop %v429
    %v431 = vmul.f32 %v415, %v430
    %v432 = vmul.f32 %v416, %v430
    %v433 = vld [vmem:[%s6] sm:$0x1]
    %v434 = vlaneseq
    %v435 = vshrl.u32 %v434, 7
    %v436 = vsub.s32 0, %v435
    %v437 = vrot.slane %v433, %v436
    %v438 = vmul.f32 %v431, %v437
    %v439 = vmul.f32 %v432, %v437
    %v440 = vld [vmem:[%s6 + $0x1] sm:$0x1]
    %v441 = vlaneseq
    %v442 = vshrl.u32 %v441, 7
    %v443 = vsub.s32 0, %v442
    %v444 = vrot.slane %v440, %v443
    %v445 = vadd.f32 %v438, %v444
    %v446 = vadd.f32 %v439, %v444
    %447 = vst.msk [vmem:[%s7] sm:$0xff] %vm404, %v445
    %448 = vst.msk [vmem:[%s7 + $0x8] sm:$0xff] %vm404, %v446
    // Predicated region
    $region38: #{forward.1} parent=1 // pred_check
      _
    $region39: #{forward.1} parent=1 // pred_check_branch
      %450 = sbr.rel (0) target = $region41
    $region40: #{forward.1} parent=1 // pred_region
      _
    $region41: #{forward.1} parent=1 // pred_fallthru
      _
    // Predicated region
    $region42: #{forward.1} parent=1 // pred_check
      _
    $region43: #{forward.1} parent=1 // pred_check_branch
      %452 = sbr.rel (0) target = $region45
    $region44: #{forward.1} parent=1 // pred_region
      _
    $region45: #{forward.1} parent=1 // pred_fallthru
      _
    %453 = vsyncpa [#allocation3], 1
    %454 = vsyncpa [#allocation5], 1

</llo_original>
